<compile_context>
chip_gen: v5e
topology: v5e:2x2
jax: 0.10.0
libtpu: 0.0.40
codegen_flags: <defaults>
</compile_context>

<pallas_src>
import jax
import jax.numpy as jnp
from jax.experimental import pallas as pl
from jax.experimental.pallas import tpu as pltpu


HIDDEN = 25  # fixed by the module


def _round_up(n, m):
    return ((n + m - 1) // m) * m


def _mlp_kernel(x_ref, w1_ref, b1_ref, w2_ref, b2_ref, w3_ref, b3_ref,
                wf_ref, bf_ref, out_ref):
    # Transpose the (tile_b, in_f) x tile to (in_f, tile_b): lane axis = batch.
    xt = x_ref[...].astype(jnp.float32).T

    def sigmoid(z):
        # Mathematically exact rewrite of sigmoid; one EUP tanh per element
        # instead of exp + divide (+ stabilizing select).
        return 0.5 * jnp.tanh(0.5 * z) + 0.5

    # fc1 + (dropout: identity) + sigmoid        -> (H, tile_b)
    h = jnp.dot(w1_ref[...], xt, preferred_element_type=jnp.float32) + b1_ref[...]
    h = sigmoid(h)

    # fc2 + (dropout: identity) + sigmoid        -> (H, tile_b)
    h = jnp.dot(w2_ref[...], h, preferred_element_type=jnp.float32) + b2_ref[...]
    h = sigmoid(h)

    # fc3 + (dropout: identity) + relu           -> (H, tile_b)
    h = jnp.dot(w3_ref[...], h, preferred_element_type=jnp.float32) + b3_ref[...]
    h = jnp.maximum(h, 0.0)

    # fcFinal + relu                             -> (out_f, tile_b), lane-dense
    o = jnp.dot(wf_ref[...], h, preferred_element_type=jnp.float32) + bf_ref[...]
    out_ref[...] = jnp.maximum(o, 0.0).astype(out_ref.dtype)


def model_structure_forward(x, params, *, tile_b=2048):
    """x: (batch, input_size) f32.  params: PyTorch-native (out, in) weights,
    (out, 1) biases.  Returns (batch, output_size) f32."""
    batch, in_f = x.shape
    h = HIDDEN
    out_f = params["wf"].shape[0]

    # Batch tile: multiple of 128 so the transposed output block is lane-dense
    # (and the x block satisfies the sublane rule); capped at the padded batch.
    tile_b = max(128, min(_round_up(tile_b, 128), _round_up(batch, 128)))
    padded = _round_up(batch, tile_b)

    # v7x megacore: with ("parallel",) semantics, give both TensorCores work
    # whenever there is enough batch to split (no effect on v5e/v6e: 1 TC).
    if padded // tile_b == 1 and padded >= 256:
        tile_b = max(128, _round_up(padded // 2, 128))
        padded = _round_up(batch, tile_b)

    if padded != batch:
        x = jnp.pad(x, ((0, padded - batch), (0, 0)))

    grid = (padded // tile_b,)

    in_specs = [
        pl.BlockSpec((tile_b, in_f), lambda i: (i, 0)),   # x (batch-tiled)
        pl.BlockSpec((h, in_f), lambda i: (0, 0)),        # w1 (resident)
        pl.BlockSpec((h, 1), lambda i: (0, 0)),           # b1
        pl.BlockSpec((h, h), lambda i: (0, 0)),           # w2
        pl.BlockSpec((h, 1), lambda i: (0, 0)),           # b2
        pl.BlockSpec((h, h), lambda i: (0, 0)),           # w3
        pl.BlockSpec((h, 1), lambda i: (0, 0)),           # b3
        pl.BlockSpec((out_f, h), lambda i: (0, 0)),       # wf
        pl.BlockSpec((out_f, 1), lambda i: (0, 0)),       # bf
    ]
    # Transposed output: (out_f, padded) so stores are 128-lane dense.
    out_spec = pl.BlockSpec((out_f, tile_b), lambda i: (0, i))

    weight_bytes = sum(int(v.size) * 4 for v in params.values())
    cost = pl.CostEstimate(
        flops=2 * padded * (in_f * h + h * h + h * h + h * out_f),
        transcendentals=2 * padded * h,                    # two tanh layers
        bytes_accessed=padded * in_f * 4 + weight_bytes + padded * out_f * 4,
    )

    out_t = pl.pallas_call(
        _mlp_kernel,
        out_shape=jax.ShapeDtypeStruct((out_f, padded), jnp.float32),
        grid=grid,
        in_specs=in_specs,
        out_specs=out_spec,
        compiler_params=pltpu.CompilerParams(
            dimension_semantics=("parallel",)),
        cost_estimate=cost,
    )(
        x,
        params["w1"], params["b1"],
        params["w2"], params["b2"],
        params["w3"], params["b3"],
        params["wf"], params["bf"],
    )
    # Tiny (out_f, padded) transpose back to (batch, out_f) in the wrapper.
    return out_t.T[:batch]


def init_params(key, input_size, output_size, hidden_size=HIDDEN):
    """Deterministic synthetic init; PyTorch-native (out, in) weight layout."""
    ks = jax.random.split(key, 8)

    def linear(kw, kb, fan_in, fan_out):
        # PyTorch nn.Linear default: U(-1/sqrt(fan_in), 1/sqrt(fan_in))
        bound = 1.0 / jnp.sqrt(fan_in)
        w = jax.random.uniform(kw, (fan_out, fan_in), jnp.float32, -bound, bound)
        b = jax.random.uniform(kb, (fan_out, 1), jnp.float32, -bound, bound)
        return w, b

    w1, b1 = linear(ks[0], ks[1], input_size, hidden_size)
    w2, b2 = linear(ks[2], ks[3], hidden_size, hidden_size)
    w3, b3 = linear(ks[4], ks[5], hidden_size, hidden_size)
    wf, bf = linear(ks[6], ks[7], hidden_size, output_size)
    return dict(w1=w1, b1=b1, w2=w2, b2=b2, w3=w3, b3=b3, wf=wf, bf=bf)


def reference_forward(x, p):
    h = jax.nn.sigmoid(x @ p["w1"].T + p["b1"].T)
    h = jax.nn.sigmoid(h @ p["w2"].T + p["b2"].T)
    h = jnp.maximum(h @ p["w3"].T + p["b3"].T, 0.0)
    return jnp.maximum(h @ p["wf"].T + p["bf"].T, 0.0)


if __name__ == "__main__":
    key = jax.random.PRNGKey(0)
    k_x, k_p = jax.random.split(key)

    # batch=200 exercises multi-step grid (tile_b -> 128, grid=(2,)) and the
    # padded tail tile.
    batch, input_size, output_size = 200, 32, 4
    x = jax.random.normal(k_x, (batch, input_size), jnp.float32)
    params = init_params(k_p, input_size, output_size)

    ref = jax.block_until_ready(reference_forward(x, params))

    # Default (large-tile) path.
    out = jax.block_until_ready(model_structure_forward(x, params))
    assert out.shape == (batch, output_size)
    assert jnp.allclose(out, ref, atol=1e-4, rtol=1e-4)

    # Small explicit tile (clamps to 128) — same result.
    out_small = jax.block_until_ready(
        model_structure_forward(x, params, tile_b=128))
    assert out_small.shape == (batch, output_size)
    assert jnp.allclose(out_small, ref, atol=1e-4, rtol=1e-4)

    print("KERNEL_OK")
</pallas_src>

<mosaic_0001>
module attributes {stable_mosaic.version = 11 : i64} {
  func.func @_mlp_kernel(%arg0: i32, %arg1: memref<128x32xf32, #tpu.memory_space<vmem>>, %arg2: memref<25x32xf32, #tpu.memory_space<vmem>>, %arg3: memref<25x1xf32, #tpu.memory_space<vmem>>, %arg4: memref<25x25xf32, #tpu.memory_space<vmem>>, %arg5: memref<25x1xf32, #tpu.memory_space<vmem>>, %arg6: memref<25x25xf32, #tpu.memory_space<vmem>>, %arg7: memref<25x1xf32, #tpu.memory_space<vmem>>, %arg8: memref<4x25xf32, #tpu.memory_space<vmem>>, %arg9: memref<4x1xf32, #tpu.memory_space<vmem>>, %arg10: memref<4x128xf32, #tpu.memory_space<vmem>>) attributes {dimension_semantics = [#tpu.dimension_semantics<parallel>], iteration_bounds = array<i64: 2>, scalar_prefetch = 0 : i64, scratch_operands = 0 : i64, tpu.core_type = #tpu.core_type<tc>, window_params = [{transform_indices = @transform_0, window_bounds = array<i64: 128, 32>}, {pipeline_mode = #tpu.pipeline_mode<synchronous>, transform_indices = @transform_1, window_bounds = array<i64: 25, 32>}, {pipeline_mode = #tpu.pipeline_mode<synchronous>, transform_indices = @transform_2, window_bounds = array<i64: 25, 1>}, {pipeline_mode = #tpu.pipeline_mode<synchronous>, transform_indices = @transform_3, window_bounds = array<i64: 25, 25>}, {pipeline_mode = #tpu.pipeline_mode<synchronous>, transform_indices = @transform_4, window_bounds = array<i64: 25, 1>}, {pipeline_mode = #tpu.pipeline_mode<synchronous>, transform_indices = @transform_5, window_bounds = array<i64: 25, 25>}, {pipeline_mode = #tpu.pipeline_mode<synchronous>, transform_indices = @transform_6, window_bounds = array<i64: 25, 1>}, {pipeline_mode = #tpu.pipeline_mode<synchronous>, transform_indices = @transform_7, window_bounds = array<i64: 4, 25>}, {pipeline_mode = #tpu.pipeline_mode<synchronous>, transform_indices = @transform_8, window_bounds = array<i64: 4, 1>}, {transform_indices = @transform_9, window_bounds = array<i64: 4, 128>}]} {
    %c0 = arith.constant 0 : index
    %c0_0 = arith.constant 0 : index
    %0 = vector.load %arg1[%c0, %c0_0] : memref<128x32xf32, #tpu.memory_space<vmem>>, vector<128x32xf32>
    %1 = tpu.transpose %0, [1, 0] : vector<128x32xf32> -> vector<32x128xf32>
    %c0_1 = arith.constant 0 : index
    %c0_2 = arith.constant 0 : index
    %2 = vector.load %arg2[%c0_1, %c0_2] : memref<25x32xf32, #tpu.memory_space<vmem>>, vector<25x32xf32>
    %cst = arith.constant dense<0.000000e+00> : vector<25x128xf32>
    %3 = tpu.matmul %2, %1, %cst {dimension_numbers = #tpu.dot_dimension_numbers<[1], [0], [0], [1], [0, 0, 1, 1], [], []>} : vector<25x32xf32>, vector<32x128xf32>, vector<25x128xf32> -> vector<25x128xf32>
    %c0_3 = arith.constant 0 : index
    %c0_4 = arith.constant 0 : index
    %4 = vector.load %arg3[%c0_3, %c0_4] : memref<25x1xf32, #tpu.memory_space<vmem>>, vector<25x1xf32>
    %5 = vector.broadcast %4 : vector<25x1xf32> to vector<25x128xf32>
    %6 = arith.addf %3, %5 : vector<25x128xf32>
    %cst_5 = arith.constant 5.000000e-01 : f32
    %7 = vector.broadcast %cst_5 : f32 to vector<25x128xf32>
    %8 = arith.mulf %7, %6 : vector<25x128xf32>
    %9 = math.tanh %8 : vector<25x128xf32>
    %cst_6 = arith.constant 5.000000e-01 : f32
    %10 = vector.broadcast %cst_6 : f32 to vector<25x128xf32>
    %11 = arith.mulf %10, %9 : vector<25x128xf32>
    %cst_7 = arith.constant 5.000000e-01 : f32
    %12 = vector.broadcast %cst_7 : f32 to vector<25x128xf32>
    %13 = arith.addf %11, %12 : vector<25x128xf32>
    %c0_8 = arith.constant 0 : index
    %c0_9 = arith.constant 0 : index
    %14 = vector.load %arg4[%c0_8, %c0_9] : memref<25x25xf32, #tpu.memory_space<vmem>>, vector<25x25xf32>
    %cst_10 = arith.constant dense<0.000000e+00> : vector<25x128xf32>
    %15 = tpu.matmul %14, %13, %cst_10 {dimension_numbers = #tpu.dot_dimension_numbers<[1], [0], [0], [1], [0, 0, 1, 1], [], []>} : vector<25x25xf32>, vector<25x128xf32>, vector<25x128xf32> -> vector<25x128xf32>
    %c0_11 = arith.constant 0 : index
    %c0_12 = arith.constant 0 : index
    %16 = vector.load %arg5[%c0_11, %c0_12] : memref<25x1xf32, #tpu.memory_space<vmem>>, vector<25x1xf32>
    %17 = vector.broadcast %16 : vector<25x1xf32> to vector<25x128xf32>
    %18 = arith.addf %15, %17 : vector<25x128xf32>
    %cst_13 = arith.constant 5.000000e-01 : f32
    %19 = vector.broadcast %cst_13 : f32 to vector<25x128xf32>
    %20 = arith.mulf %19, %18 : vector<25x128xf32>
    %21 = math.tanh %20 : vector<25x128xf32>
    %cst_14 = arith.constant 5.000000e-01 : f32
    %22 = vector.broadcast %cst_14 : f32 to vector<25x128xf32>
    %23 = arith.mulf %22, %21 : vector<25x128xf32>
    %cst_15 = arith.constant 5.000000e-01 : f32
    %24 = vector.broadcast %cst_15 : f32 to vector<25x128xf32>
    %25 = arith.addf %23, %24 : vector<25x128xf32>
    %c0_16 = arith.constant 0 : index
    %c0_17 = arith.constant 0 : index
    %26 = vector.load %arg6[%c0_16, %c0_17] : memref<25x25xf32, #tpu.memory_space<vmem>>, vector<25x25xf32>
    %cst_18 = arith.constant dense<0.000000e+00> : vector<25x128xf32>
    %27 = tpu.matmul %26, %25, %cst_18 {dimension_numbers = #tpu.dot_dimension_numbers<[1], [0], [0], [1], [0, 0, 1, 1], [], []>} : vector<25x25xf32>, vector<25x128xf32>, vector<25x128xf32> -> vector<25x128xf32>
    %c0_19 = arith.constant 0 : index
    %c0_20 = arith.constant 0 : index
    %28 = vector.load %arg7[%c0_19, %c0_20] : memref<25x1xf32, #tpu.memory_space<vmem>>, vector<25x1xf32>
    %29 = vector.broadcast %28 : vector<25x1xf32> to vector<25x128xf32>
    %30 = arith.addf %27, %29 : vector<25x128xf32>
    %cst_21 = arith.constant 0.000000e+00 : f32
    %31 = vector.broadcast %cst_21 : f32 to vector<25x128xf32>
    %32 = arith.maximumf %30, %31 : vector<25x128xf32>
    %c0_22 = arith.constant 0 : index
    %c0_23 = arith.constant 0 : index
    %33 = vector.load %arg8[%c0_22, %c0_23] : memref<4x25xf32, #tpu.memory_space<vmem>>, vector<4x25xf32>
    %cst_24 = arith.constant dense<0.000000e+00> : vector<4x128xf32>
    %34 = tpu.matmul %33, %32, %cst_24 {dimension_numbers = #tpu.dot_dimension_numbers<[1], [0], [0], [1], [0, 0, 1, 1], [], []>} : vector<4x25xf32>, vector<25x128xf32>, vector<4x128xf32> -> vector<4x128xf32>
    %c0_25 = arith.constant 0 : index
    %c0_26 = arith.constant 0 : index
    %35 = vector.load %arg9[%c0_25, %c0_26] : memref<4x1xf32, #tpu.memory_space<vmem>>, vector<4x1xf32>
    %36 = vector.broadcast %35 : vector<4x1xf32> to vector<4x128xf32>
    %37 = arith.addf %34, %36 : vector<4x128xf32>
    %cst_27 = arith.constant 0.000000e+00 : f32
    %38 = vector.broadcast %cst_27 : f32 to vector<4x128xf32>
    %39 = arith.maximumf %37, %38 : vector<4x128xf32>
    %c0_28 = arith.constant 0 : index
    %c0_29 = arith.constant 0 : index
    %40 = vector.load %arg10[%c0_28, %c0_29] : memref<4x128xf32, #tpu.memory_space<vmem>>, vector<4x128xf32>
    tpu.vector_store %arg10[%c0_28, %c0_29], %39 {strides = array<i32>} : memref<4x128xf32, #tpu.memory_space<vmem>>, vector<4x128xf32>,
    return
  }
  func.func @transform_0(%arg0: i32) -> (i32, i32) {
    %c0_i32 = arith.constant 0 : i32
    %c0_i32_0 = arith.constant 0 : i32
    return %arg0, %c0_i32 : i32, i32
  }
  func.func @transform_1(%arg0: i32) -> (i32, i32) {
    %c0_i32 = arith.constant 0 : i32
    %c0_i32_0 = arith.constant 0 : i32
    %c0_i32_1 = arith.constant 0 : i32
    return %c0_i32, %c0_i32_0 : i32, i32
  }
  func.func @transform_2(%arg0: i32) -> (i32, i32) {
    %c0_i32 = arith.constant 0 : i32
    %c0_i32_0 = arith.constant 0 : i32
    %c0_i32_1 = arith.constant 0 : i32
    return %c0_i32, %c0_i32_0 : i32, i32
  }
  func.func @transform_3(%arg0: i32) -> (i32, i32) {
    %c0_i32 = arith.constant 0 : i32
    %c0_i32_0 = arith.constant 0 : i32
    %c0_i32_1 = arith.constant 0 : i32
    return %c0_i32, %c0_i32_0 : i32, i32
  }
  func.func @transform_4(%arg0: i32) -> (i32, i32) {
    %c0_i32 = arith.constant 0 : i32
    %c0_i32_0 = arith.constant 0 : i32
    %c0_i32_1 = arith.constant 0 : i32
    return %c0_i32, %c0_i32_0 : i32, i32
  }
  func.func @transform_5(%arg0: i32) -> (i32, i32) {
    %c0_i32 = arith.constant 0 : i32
    %c0_i32_0 = arith.constant 0 : i32
    %c0_i32_1 = arith.constant 0 : i32
    return %c0_i32, %c0_i32_0 : i32, i32
  }
  func.func @transform_6(%arg0: i32) -> (i32, i32) {
    %c0_i32 = arith.constant 0 : i32
    %c0_i32_0 = arith.constant 0 : i32
    %c0_i32_1 = arith.constant 0 : i32
    return %c0_i32, %c0_i32_0 : i32, i32
  }
  func.func @transform_7(%arg0: i32) -> (i32, i32) {
    %c0_i32 = arith.constant 0 : i32
    %c0_i32_0 = arith.constant 0 : i32
    %c0_i32_1 = arith.constant 0 : i32
    return %c0_i32, %c0_i32_0 : i32, i32
  }
  func.func @transform_8(%arg0: i32) -> (i32, i32) {
    %c0_i32 = arith.constant 0 : i32
    %c0_i32_0 = arith.constant 0 : i32
    %c0_i32_1 = arith.constant 0 : i32
    return %c0_i32, %c0_i32_0 : i32, i32
  }
  func.func @transform_9(%arg0: i32) -> (i32, i32) {
    %c0_i32 = arith.constant 0 : i32
    %c0_i32_0 = arith.constant 0 : i32
    return %c0_i32, %arg0 : i32, i32
  }
}

</mosaic_0001>

<llo_original>
// kernel: tpu_custom_call.1
$region0: #{tpu_custom_call.1}
  #allocation0 [shape = 'u32[]', space=smem, size = 0x4, offset = 0x4, fixed_abs, tag = 'smem constant byte address 0x4 - core index']
  #allocation1 [shape = 'u32[72,128]{1,0:T(1,128)}', space=vmem, size = 0x9000, scoped, tag = 'internal scratch']
  %s0 = inlined_call_operand.vmem [shape: f32[256,32], index: 0, kind: input, shape index: {}]
  %s1 = inlined_call_operand.vmem [shape: f32[25,32], index: 1, kind: input, shape index: {}]
  %s2 = inlined_call_operand.vmem [shape: f32[25,1], index: 2, kind: input, shape index: {}]
  %s3 = inlined_call_operand.vmem [shape: f32[25,25], index: 3, kind: input, shape index: {}]
  %s4 = inlined_call_operand.vmem [shape: f32[25,1], index: 4, kind: input, shape index: {}]
  %s5 = inlined_call_operand.vmem [shape: f32[25,25], index: 5, kind: input, shape index: {}]
  %s6 = inlined_call_operand.vmem [shape: f32[25,1], index: 6, kind: input, shape index: {}]
  %s7 = inlined_call_operand.vmem [shape: f32[4,25], index: 7, kind: input, shape index: {}]
  %s8 = inlined_call_operand.vmem [shape: f32[4,1], index: 8, kind: input, shape index: {}]
  %s9 = inlined_call_operand.hbm [shape: f32[4,256], index: 9, kind: output, shape index: {}]
  %s10 = sld [smem:[#allocation0]]
  $region69: #{tpu_custom_call.1} parent=0
    _
  %s12 = ssub.s32 1, %s10
  %s13 = scalar_select 0, %s12, %s10
  $region1: #{tpu_custom_call.1} parent=0
    #allocation2 [shape = 'u8[4096]{0}', space=vmem, size = 0x1000, scoped, tag = 'output window, operand 0']
    #allocation3 [shape = 's32[2]{0}', space=sflag, size = 0x8, scoped, tag = 'scoped memory for tpu_custom_call.1']
    %14 = vsyncpa [#allocation3], 0
    %s15 = scalar_lea.sflag [#allocation3], 1
    %16 = vsyncpa %s15, 0
    loop: start=0, step=1, limit=4
    $region2: #{tpu_custom_call.1} parent=1 // loop_pre_header
      _
    $region3: #{tpu_custom_call.1} parent=1 // loop_header
      %s18 = sphi 0, %s22
      %p19 = scmp.ge.s32.totalorder %s18, 4
      %s28 = sphi 0, %s30
      %s31 = sphi 0, %s28
      %s32 = sphi 0, %s31
      %s48 = sphi 0, %s32
      %s52 = sphi 0, %s52
      %s54 = sphi 0, %s52
      %s55 = sphi 0, %s54
      %s69 = sphi 0, %s55
      %s73 = sphi 0, %s73
      %s75 = sphi 0, %s73
      %s76 = sphi 0, %s75
      %s90 = sphi 0, %s76
      %s94 = sphi 0, %s94
      %s96 = sphi 0, %s94
      %s97 = sphi 0, %s96
      %s111 = sphi 0, %s97
      %s115 = sphi 0, %s115
      %s117 = sphi 0, %s115
      %s118 = sphi 0, %s117
      %s132 = sphi 0, %s118
      %s136 = sphi 0, %s136
      %s138 = sphi 0, %s136
      %s139 = sphi 0, %s138
      %s153 = sphi 0, %s139
      %s157 = sphi 0, %s157
      %s159 = sphi 0, %s157
      %s160 = sphi 0, %s159
      %s174 = sphi 0, %s160
      %s178 = sphi 0, %s178
      %s180 = sphi 0, %s178
      %s181 = sphi 0, %s180
      %s195 = sphi 0, %s181
      %s199 = sphi 0, %s199
      %s201 = sphi 0, %s199
      %s202 = sphi 0, %s201
      %s216 = sphi 0, %s202
      %s222 = sphi 0, %s224
      %s225 = sphi 0, %s222
      %s226 = sphi 0, %s225
      %s242 = sphi 0, %s226
    $region4: #{tpu_custom_call.1} parent=1 // loop_header_branch
      %21 = sbr.rel (%p19) target = $region8
    $region5: #{tpu_custom_call.1} parent=1 // loop_body
      %s23 = ssub.s32 %s18, 1
      %s24 = ssub.s32 %s18, 2
      %s25 = sadd.s32 %s18, 1
      %s26 = ssub.s32 %s18, %s25
      %p27 = scmp.eq.s32.totalorder %s26, 0
      %s29 = sadd.s32 %s28, 1
      %s30 = scalar_select %p27, %s28, %s29
      %p33 = pneg %p27
      %p34 = scmp.eq.s32.totalorder %s18, 1
      %p35 = por %p33, %p34
      %p36 = scmp.ne.s32.totalorder %s28, %s31
      %p37 = scmp.eq.s32.totalorder %s18, 0
      %p38 = por %p36, %p37
      %p39 = scmp.ne.s32.totalorder %s28, %s31
      %p40 = scmp.eq.s32.totalorder %s23, 1
      %p41 = por %p39, %p40
      %p42 = scmp.ne.s32.totalorder %s31, %s32
      %p43 = scmp.eq.s32.totalorder %s23, 0
      %p44 = por %p42, %p43
      %p45 = scmp.ne.s32.totalorder %s31, %s32
      %p46 = scmp.eq.s32.totalorder %s24, 1
      %p47 = por %p45, %p46
      %p49 = scmp.ne.s32.totalorder %s32, %s48
      %p50 = scmp.eq.s32.totalorder %s24, 0
      %p51 = por %p49, %p50
      %s53 = sadd.s32 %s52, 1
      %p56 = scmp.eq.s32.totalorder %s18, 1
      %p57 = scmp.ne.s32.totalorder %s52, %s54
      %p58 = scmp.eq.s32.totalorder %s18, 0
      %p59 = por %p57, %p58
      %p60 = scmp.ne.s32.totalorder %s52, %s54
      %p61 = scmp.eq.s32.totalorder %s23, 1
      %p62 = por %p60, %p61
      %p63 = scmp.ne.s32.totalorder %s54, %s55
      %p64 = scmp.eq.s32.totalorder %s23, 0
      %p65 = por %p63, %p64
      %p66 = scmp.ne.s32.totalorder %s54, %s55
      %p67 = scmp.eq.s32.totalorder %s24, 1
      %p68 = por %p66, %p67
      %p70 = scmp.ne.s32.totalorder %s55, %s69
      %p71 = scmp.eq.s32.totalorder %s24, 0
      %p72 = por %p70, %p71
      %s74 = sadd.s32 %s73, 1
      %p77 = scmp.eq.s32.totalorder %s18, 1
      %p78 = scmp.ne.s32.totalorder %s73, %s75
      %p79 = scmp.eq.s32.totalorder %s18, 0
      %p80 = por %p78, %p79
      %p81 = scmp.ne.s32.totalorder %s73, %s75
      %p82 = scmp.eq.s32.totalorder %s23, 1
      %p83 = por %p81, %p82
      %p84 = scmp.ne.s32.totalorder %s75, %s76
      %p85 = scmp.eq.s32.totalorder %s23, 0
      %p86 = por %p84, %p85
      %p87 = scmp.ne.s32.totalorder %s75, %s76
      %p88 = scmp.eq.s32.totalorder %s24, 1
      %p89 = por %p87, %p88
      %p91 = scmp.ne.s32.totalorder %s76, %s90
      %p92 = scmp.eq.s32.totalorder %s24, 0
      %p93 = por %p91, %p92
      %s95 = sadd.s32 %s94, 1
      %p98 = scmp.eq.s32.totalorder %s18, 1
      %p99 = scmp.ne.s32.totalorder %s94, %s96
      %p100 = scmp.eq.s32.totalorder %s18, 0
      %p101 = por %p99, %p100
      %p102 = scmp.ne.s32.totalorder %s94, %s96
      %p103 = scmp.eq.s32.totalorder %s23, 1
      %p104 = por %p102, %p103
      %p105 = scmp.ne.s32.totalorder %s96, %s97
      %p106 = scmp.eq.s32.totalorder %s23, 0
      %p107 = por %p105, %p106
      %p108 = scmp.ne.s32.totalorder %s96, %s97
      %p109 = scmp.eq.s32.totalorder %s24, 1
      %p110 = por %p108, %p109
      %p112 = scmp.ne.s32.totalorder %s97, %s111
      %p113 = scmp.eq.s32.totalorder %s24, 0
      %p114 = por %p112, %p113
      %s116 = sadd.s32 %s115, 1
      %p119 = scmp.eq.s32.totalorder %s18, 1
      %p120 = scmp.ne.s32.totalorder %s115, %s117
      %p121 = scmp.eq.s32.totalorder %s18, 0
      %p122 = por %p120, %p121
      %p123 = scmp.ne.s32.totalorder %s115, %s117
      %p124 = scmp.eq.s32.totalorder %s23, 1
      %p125 = por %p123, %p124
      %p126 = scmp.ne.s32.totalorder %s117, %s118
      %p127 = scmp.eq.s32.totalorder %s23, 0
      %p128 = por %p126, %p127
      %p129 = scmp.ne.s32.totalorder %s117, %s118
      %p130 = scmp.eq.s32.totalorder %s24, 1
      %p131 = por %p129, %p130
      %p133 = scmp.ne.s32.totalorder %s118, %s132
      %p134 = scmp.eq.s32.totalorder %s24, 0
      %p135 = por %p133, %p134
      %s137 = sadd.s32 %s136, 1
      %p140 = scmp.eq.s32.totalorder %s18, 1
      %p141 = scmp.ne.s32.totalorder %s136, %s138
      %p142 = scmp.eq.s32.totalorder %s18, 0
      %p143 = por %p141, %p142
      %p144 = scmp.ne.s32.totalorder %s136, %s138
      %p145 = scmp.eq.s32.totalorder %s23, 1
      %p146 = por %p144, %p145
      %p147 = scmp.ne.s32.totalorder %s138, %s139
      %p148 = scmp.eq.s32.totalorder %s23, 0
      %p149 = por %p147, %p148
      %p150 = scmp.ne.s32.totalorder %s138, %s139
      %p151 = scmp.eq.s32.totalorder %s24, 1
      %p152 = por %p150, %p151
      %p154 = scmp.ne.s32.totalorder %s139, %s153
      %p155 = scmp.eq.s32.totalorder %s24, 0
      %p156 = por %p154, %p155
      %s158 = sadd.s32 %s157, 1
      %p161 = scmp.eq.s32.totalorder %s18, 1
      %p162 = scmp.ne.s32.totalorder %s157, %s159
      %p163 = scmp.eq.s32.totalorder %s18, 0
      %p164 = por %p162, %p163
      %p165 = scmp.ne.s32.totalorder %s157, %s159
      %p166 = scmp.eq.s32.totalorder %s23, 1
      %p167 = por %p165, %p166
      %p168 = scmp.ne.s32.totalorder %s159, %s160
      %p169 = scmp.eq.s32.totalorder %s23, 0
      %p170 = por %p168, %p169
      %p171 = scmp.ne.s32.totalorder %s159, %s160
      %p172 = scmp.eq.s32.totalorder %s24, 1
      %p173 = por %p171, %p172
      %p175 = scmp.ne.s32.totalorder %s160, %s174
      %p176 = scmp.eq.s32.totalorder %s24, 0
      %p177 = por %p175, %p176
      %s179 = sadd.s32 %s178, 1
      %p182 = scmp.eq.s32.totalorder %s18, 1
      %p183 = scmp.ne.s32.totalorder %s178, %s180
      %p184 = scmp.eq.s32.totalorder %s18, 0
      %p185 = por %p183, %p184
      %p186 = scmp.ne.s32.totalorder %s178, %s180
      %p187 = scmp.eq.s32.totalorder %s23, 1
      %p188 = por %p186, %p187
      %p189 = scmp.ne.s32.totalorder %s180, %s181
      %p190 = scmp.eq.s32.totalorder %s23, 0
      %p191 = por %p189, %p190
      %p192 = scmp.ne.s32.totalorder %s180, %s181
      %p193 = scmp.eq.s32.totalorder %s24, 1
      %p194 = por %p192, %p193
      %p196 = scmp.ne.s32.totalorder %s181, %s195
      %p197 = scmp.eq.s32.totalorder %s24, 0
      %p198 = por %p196, %p197
      %s200 = sadd.s32 %s199, 1
      %p203 = scmp.eq.s32.totalorder %s18, 1
      %p204 = scmp.ne.s32.totalorder %s199, %s201
      %p205 = scmp.eq.s32.totalorder %s18, 0
      %p206 = por %p204, %p205
      %p207 = scmp.ne.s32.totalorder %s199, %s201
      %p208 = scmp.eq.s32.totalorder %s23, 1
      %p209 = por %p207, %p208
      %p210 = scmp.ne.s32.totalorder %s201, %s202
      %p211 = scmp.eq.s32.totalorder %s23, 0
      %p212 = por %p210, %p211
      %p213 = scmp.ne.s32.totalorder %s201, %s202
      %p214 = scmp.eq.s32.totalorder %s24, 1
      %p215 = por %p213, %p214
      %p217 = scmp.ne.s32.totalorder %s202, %s216
      %p218 = scmp.eq.s32.totalorder %s24, 0
      %p219 = por %p217, %p218
      %s220 = ssub.s32 %s18, %s25
      %p221 = scmp.eq.s32.totalorder %s220, 0
      %s223 = sadd.s32 %s222, 1
      %s224 = scalar_select %p221, %s222, %s223
      %p227 = pneg %p221
      %p228 = scmp.eq.s32.totalorder %s18, 1
      %p229 = por %p227, %p228
      %p230 = scmp.ne.s32.totalorder %s222, %s225
      %p231 = scmp.eq.s32.totalorder %s18, 0
      %p232 = por %p230, %p231
      %p233 = scmp.ne.s32.totalorder %s222, %s225
      %p234 = scmp.eq.s32.totalorder %s23, 1
      %p235 = por %p233, %p234
      %p236 = scmp.ne.s32.totalorder %s225, %s226
      %p237 = scmp.eq.s32.totalorder %s23, 0
      %p238 = por %p236, %p237
      %p239 = scmp.ne.s32.totalorder %s225, %s226
      %p240 = scmp.eq.s32.totalorder %s24, 1
      %p241 = por %p239, %p240
      %p243 = scmp.ne.s32.totalorder %s226, %s242
      %p244 = scmp.eq.s32.totalorder %s24, 0
      %p245 = por %p243, %p244
      %p246 = scmp.le.s32.totalorder 1, %s18
      %p247 = scmp.lt.s32.totalorder %s18, 3
      %p248 = pnand %p246, %p247
      %p249 = pneg %p248
      // Predicated region
      $region9: #{tpu_custom_call.1} parent=5 // pred_check
        _
      $region10: #{tpu_custom_call.1} parent=5 // pred_check_branch
        %251 = sbr.rel (%p248) target = $region12
      $region11: #{tpu_custom_call.1} parent=5 // pred_region
        %s252 = ssub.s32 %s18, 1
        // Predicated region
        $region13: #{tpu_custom_call.1} parent=11 // pred_check
          %p253 = pneg %p65
        $region14: #{tpu_custom_call.1} parent=11 // pred_check_branch
          %255 = sbr.rel (%p253) target = $region16
        $region15: #{tpu_custom_call.1} parent=11 // pred_region
          _
        $region16: #{tpu_custom_call.1} parent=11 // pred_fallthru
          _
        // Predicated region
        $region17: #{tpu_custom_call.1} parent=11 // pred_check
          %p256 = pneg %p86
        $region18: #{tpu_custom_call.1} parent=11 // pred_check_branch
          %258 = sbr.rel (%p256) target = $region20
        $region19: #{tpu_custom_call.1} parent=11 // pred_region
          _
        $region20: #{tpu_custom_call.1} parent=11 // pred_fallthru
          _
        // Predicated region
        $region21: #{tpu_custom_call.1} parent=11 // pred_check
          %p259 = pneg %p107
        $region22: #{tpu_custom_call.1} parent=11 // pred_check_branch
          %261 = sbr.rel (%p259) target = $region24
        $region23: #{tpu_custom_call.1} parent=11 // pred_region
          _
        $region24: #{tpu_custom_call.1} parent=11 // pred_fallthru
          _
        // Predicated region
        $region25: #{tpu_custom_call.1} parent=11 // pred_check
          %p262 = pneg %p128
        $region26: #{tpu_custom_call.1} parent=11 // pred_check_branch
          %264 = sbr.rel (%p262) target = $region28
        $region27: #{tpu_custom_call.1} parent=11 // pred_region
          _
        $region28: #{tpu_custom_call.1} parent=11 // pred_fallthru
          _
        // Predicated region
        $region29: #{tpu_custom_call.1} parent=11 // pred_check
          %p265 = pneg %p149
        $region30: #{tpu_custom_call.1} parent=11 // pred_check_branch
          %267 = sbr.rel (%p265) target = $region32
        $region31: #{tpu_custom_call.1} parent=11 // pred_region
          _
        $region32: #{tpu_custom_call.1} parent=11 // pred_fallthru
          _
        // Predicated region
        $region33: #{tpu_custom_call.1} parent=11 // pred_check
          %p268 = pneg %p170
        $region34: #{tpu_custom_call.1} parent=11 // pred_check_branch
          %270 = sbr.rel (%p268) target = $region36
        $region35: #{tpu_custom_call.1} parent=11 // pred_region
          _
        $region36: #{tpu_custom_call.1} parent=11 // pred_fallthru
          _
        // Predicated region
        $region37: #{tpu_custom_call.1} parent=11 // pred_check
          %p271 = pneg %p191
        $region38: #{tpu_custom_call.1} parent=11 // pred_check_branch
          %273 = sbr.rel (%p271) target = $region40
        $region39: #{tpu_custom_call.1} parent=11 // pred_region
          _
        $region40: #{tpu_custom_call.1} parent=11 // pred_fallthru
          _
        // Predicated region
        $region41: #{tpu_custom_call.1} parent=11 // pred_check
          %p274 = pneg %p212
        $region42: #{tpu_custom_call.1} parent=11 // pred_check_branch
          %276 = sbr.rel (%p274) target = $region44
        $region43: #{tpu_custom_call.1} parent=11 // pred_region
          _
        $region44: #{tpu_custom_call.1} parent=11 // pred_fallthru
          _
      $region12: #{tpu_custom_call.1} parent=5 // pred_fallthru
        _
      %p277 = scmp.lt.s32.totalorder %s18, 2
      // Predicated region
      $region45: #{tpu_custom_call.1} parent=5 // pred_check
        %p278 = pneg %p277
      $region46: #{tpu_custom_call.1} parent=5 // pred_check_branch
        %280 = sbr.rel (%p278) target = $region48
      $region47: #{tpu_custom_call.1} parent=5 // pred_region
        // Predicated region
        $region49: #{tpu_custom_call.1} parent=47 // pred_check
          %p281 = pneg %p38
        $region50: #{tpu_custom_call.1} parent=47 // pred_check_branch
          %283 = sbr.rel (%p281) target = $region52
        $region51: #{tpu_custom_call.1} parent=47 // pred_region
          %s284 = smul.u32 16, %s18
          %p285 = scmp.lt.s32.totalorder %s284, 31
          %s286 = scalar_select %p285, %s284, 31
          %s287 = smul.addr %s286, 8
          %s288 = scalar_lea.vmem %s0, %s287
          %s289 = smul.u32 16, %s18
        $region52: #{tpu_custom_call.1} parent=47 // pred_fallthru
          _
      $region48: #{tpu_custom_call.1} parent=5 // pred_fallthru
        _
      %p290 = scmp.le.s32.totalorder 1, %s18
      %p291 = scmp.lt.s32.totalorder %s18, 3
      %p292 = pnand %p290, %p291
      %p293 = pneg %p292
      // Predicated region
      $region53: #{tpu_custom_call.1} parent=5 // pred_check
        _
      $region54: #{tpu_custom_call.1} parent=5 // pred_check_branch
        %295 = sbr.rel (%p292) target = $region56
      $region55: #{tpu_custom_call.1} parent=5 // pred_region
        %s296 = ssub.s32 %s18, 1
        %s297 = smul.u32 16, %s23
        %p298 = scmp.lt.s32.totalorder %s297, 31
        %s299 = scalar_select %p298, %s297, 31
        %s300 = smul.addr %s299, 8
        %s301 = scalar_lea.vmem %s0, %s300
        %p302 = pneg %p44
        %p303 = pneg %p41
        %p304 = pneg %p65
        %p305 = pneg %p62
        %p306 = pneg %p86
        %p307 = pneg %p83
        %p308 = pneg %p107
        %p309 = pneg %p104
        %p310 = pneg %p128
        %p311 = pneg %p125
        %p312 = pneg %p149
        %p313 = pneg %p146
        %p314 = pneg %p170
        %p315 = pneg %p167
        %p316 = pneg %p191
        %p317 = pneg %p188
        %p318 = pneg %p212
        %p319 = pneg %p209
        %p320 = pneg %p238
        %p321 = pneg %p235
        %s322 = sand.u32 %s225, 1
        %s323 = scalar_lea.sflag [#allocation3], %s322
        %s324 = sand.u32 %s225, 1
        %s325 = smul.addr %s324, 4
        %s326 = scalar_lea.vmem [#allocation2], %s325
        %s327 = smul.u32 16, %s23
        %p328 = scmp.lt.s32.totalorder %s327, 31
        %s329 = scalar_select %p328, %s327, 31
        %s330 = smul.addr %s329, 8
        %s331 = scalar_lea.vmem %s0, %s330
        %s332 = smul.u32 16, %s23
        %v333 = vld [vmem:[%s331] sm:$0xff]
        %v334 = vld [vmem:[%s331 + $0x8] sm:$0xff]
        %v335 = vld [vmem:[%s331 + $0x10] sm:$0xff]
        %v336 = vld [vmem:[%s331 + $0x18] sm:$0xff]
        %v337 = vld [vmem:[%s331 + $0x20] sm:$0xff]
        %v338 = vld [vmem:[%s331 + $0x28] sm:$0xff]
        %v339 = vld [vmem:[%s331 + $0x30] sm:$0xff]
        %v340 = vld [vmem:[%s331 + $0x38] sm:$0xff]
        %v341 = vld [vmem:[%s331 + $0x40] sm:$0xff]
        %v342 = vld [vmem:[%s331 + $0x48] sm:$0xff]
        %v343 = vld [vmem:[%s331 + $0x50] sm:$0xff]
        %v344 = vld [vmem:[%s331 + $0x58] sm:$0xff]
        %v345 = vld [vmem:[%s331 + $0x60] sm:$0xff]
        %v346 = vld [vmem:[%s331 + $0x68] sm:$0xff]
        %v347 = vld [vmem:[%s331 + $0x70] sm:$0xff]
        %v348 = vld [vmem:[%s331 + $0x78] sm:$0xff]
        %v349 = vld [vmem:[%s1] sm:$0xff]
        %v350 = vld [vmem:[%s1 + $0x8] sm:$0xff]
        %v351 = vld [vmem:[%s1 + $0x10] sm:$0xff]
        %v352 = vld [vmem:[%s1 + $0x18] sm:$0x1]
        %v353 = vld [vmem:[%s2] sm:$0xff]
        %v354 = vld [vmem:[%s2 + $0x8] sm:$0xff]
        %v355 = vld [vmem:[%s2 + $0x10] sm:$0xff]
        %v356 = vld [vmem:[%s2 + $0x18] sm:$0x1]
        %358 = vset.pattern.permute.xlu0 0
        %359 = vperm.xlu0 %358, %v353
        %v360 = vpop.permute.xlu0 %359
        %363 = vset.pattern.permute.xlu0 0
        %364 = vperm.xlu0 %363, %v354
        %v365 = vpop.permute.xlu0 %364
        %368 = vset.pattern.permute.xlu0 0
        %369 = vperm.xlu0 %368, %v355
        %v370 = vpop.permute.xlu0 %369
        %373 = vset.pattern.permute.xlu0 0
        %374 = vperm.xlu0 %373, %v356
        %v375 = vpop.permute.xlu0 %374
        %vm377 = vcmask 261120
        %v379 = vsel %vm377, %v349, 0
        %v382 = vsel %vm377, %v350, 0
        %v385 = vsel %vm377, %v351, 0
        %v388 = vsel %vm377, %v352, 0
        %v391 = vsel %vm377, %v333, 0
        %v394 = vsel %vm377, %v334, 0
        %v397 = vsel %vm377, %v335, 0
        %v400 = vsel %vm377, %v336, 0
        %v403 = vsel %vm377, %v337, 0
        %v406 = vsel %vm377, %v338, 0
        %v409 = vsel %vm377, %v339, 0
        %v412 = vsel %vm377, %v340, 0
        %v415 = vsel %vm377, %v341, 0
        %v418 = vsel %vm377, %v342, 0
        %v421 = vsel %vm377, %v343, 0
        %v424 = vsel %vm377, %v344, 0
        %v427 = vsel %vm377, %v345, 0
        %v430 = vsel %vm377, %v346, 0
        %v433 = vsel %vm377, %v347, 0
        %v436 = vsel %vm377, %v348, 0
        %438 = vmatpush.xpose.msra.mxu0 %v436
        %439 = vmatpush.xpose.msra.mxu0 %v433
        %440 = vmatpush.xpose.msra.mxu0 %v430
        %441 = vmatpush.xpose.msra.mxu0 %v427
        %442 = vmatpush.xpose.msra.mxu0 %v424
        %443 = vmatpush.xpose.msra.mxu0 %v421
        %444 = vmatpush.xpose.msra.mxu0 %v418
        %445 = vmatpush.xpose.msra.mxu0 %v415
        %446 = vmatpush.xpose.msra.mxu0 %v412
        %447 = vmatpush.xpose.msra.mxu0 %v409
        %448 = vmatpush.xpose.msra.mxu0 %v406
        %449 = vmatpush.xpose.msra.mxu0 %v403
        %450 = vmatpush.xpose.msra.mxu0 %v400
        %451 = vmatpush.xpose.msra.mxu0 %v397
        %452 = vmatpush.xpose.msra.mxu0 %v394
        %453 = vmatpush.xpose.msra.mxu0 %v391
        %454 = vmatmul.f32.gmra.mxu0 %v379
        %v455 = vpop.f32.mrf.mxu0
        %v456 = vadd.f32 %v360, %v455
        %457 = vmatmul.f32.gmra.mxu0 %v382
        %v458 = vpop.f32.mrf.mxu0
        %v459 = vadd.f32 %v365, %v458
        %460 = vmatmul.f32.gmra.mxu0 %v385
        %v461 = vpop.f32.mrf.mxu0
        %v462 = vadd.f32 %v370, %v461
        %463 = vmatmul.f32.gmra.mxu0 %v388
        %v464 = vpop.f32.mrf.mxu0
        %v465 = vadd.f32 %v375, %v464
        %466 = vdwg.mxu0
        %v467 = vmul.f32 %v456, 0.5
        %v468 = vmul.f32 %v459, 0.5
        %v469 = vmul.f32 %v462, 0.5
        %v470 = vmul.f32 %v465, 0.5
        %v471 = vtanh.pop %v467
        %v472 = vtanh.pop %v468
        %v473 = vtanh.pop %v469
        %v474 = vtanh.pop %v470
        %v475 = vmul.f32 %v471, 0.5
        %v476 = vmul.f32 %v472, 0.5
        %v477 = vmul.f32 %v473, 0.5
        %v478 = vmul.f32 %v474, 0.5
        %v479 = vadd.f32 %v475, 0.5
        %v480 = vadd.f32 %v476, 0.5
        %v481 = vadd.f32 %v477, 0.5
        %v482 = vadd.f32 %v478, 0.5
        %v483 = vld [vmem:[%s3] sm:$0xff]
        %v484 = vld [vmem:[%s3 + $0x8] sm:$0xff]
        %v485 = vld [vmem:[%s3 + $0x10] sm:$0xff]
        %v486 = vld [vmem:[%s3 + $0x18] sm:$0x1]
        %v487 = vld [vmem:[%s4] sm:$0xff]
        %v488 = vld [vmem:[%s4 + $0x8] sm:$0xff]
        %v489 = vld [vmem:[%s4 + $0x10] sm:$0xff]
        %v490 = vld [vmem:[%s4 + $0x18] sm:$0x1]
        %492 = vset.pattern.permute.xlu0 0
        %493 = vperm.xlu0 %492, %v487
        %v494 = vpop.permute.xlu0 %493
        %497 = vset.pattern.permute.xlu0 0
        %498 = vperm.xlu0 %497, %v488
        %v499 = vpop.permute.xlu0 %498
        %502 = vset.pattern.permute.xlu0 0
        %503 = vperm.xlu0 %502, %v489
        %v504 = vpop.permute.xlu0 %503
        %507 = vset.pattern.permute.xlu0 0
        %508 = vperm.xlu0 %507, %v490
        %v509 = vpop.permute.xlu0 %508
        %vm511 = vcmask 203776
        %v513 = vsel %vm511, %v483, 0
        %v516 = vsel %vm511, %v484, 0
        %v519 = vsel %vm511, %v485, 0
        %v522 = vsel %vm511, %v486, 0
        %vm524 = vcmask 1040384
        %v526 = vsel %vm524, %v482, 0
        %528 = vmatpush.msra.mxu0 0.0
        %529 = vmatpush.msra.mxu0 0.0
        %530 = vmatpush.msra.mxu0 0.0
        %531 = vmatpush.msra.mxu0 0.0
        %532 = vmatpush.msra.mxu0 0.0
        %533 = vmatpush.msra.mxu0 0.0
        %534 = vmatpush.msra.mxu0 0.0
        %535 = vmatpush.msra.mxu0 0.0
        %536 = vmatpush.msra.mxu0 0.0
        %537 = vmatpush.msra.mxu0 0.0
        %538 = vmatpush.msra.mxu0 0.0
        %539 = vmatpush.msra.mxu0 0.0
        %540 = vmatpush.msra.mxu0 %v526
        %541 = vmatpush.msra.mxu0 %v481
        %542 = vmatpush.msra.mxu0 %v480
        %543 = vmatpush.msra.mxu0 %v479
        %544 = vmatmul.f32.gmra.mxu0 %v513
        %v545 = vpop.f32.mrf.mxu0
        %v546 = vadd.f32 %v494, %v545
        %547 = vmatmul.f32.gmra.mxu0 %v516
        %v548 = vpop.f32.mrf.mxu0
        %v549 = vadd.f32 %v499, %v548
        %550 = vmatmul.f32.gmra.mxu0 %v519
        %v551 = vpop.f32.mrf.mxu0
        %v552 = vadd.f32 %v504, %v551
        %553 = vmatmul.f32.gmra.mxu0 %v522
        %v554 = vpop.f32.mrf.mxu0
        %v555 = vadd.f32 %v509, %v554
        %556 = vdwg.mxu0
        %v557 = vmul.f32 %v546, 0.5
        %v558 = vmul.f32 %v549, 0.5
        %v559 = vmul.f32 %v552, 0.5
        %v560 = vmul.f32 %v555, 0.5
        %v561 = vtanh.pop %v557
        %v562 = vtanh.pop %v558
        %v563 = vtanh.pop %v559
        %v564 = vtanh.pop %v560
        %v565 = vmul.f32 %v561, 0.5
        %v566 = vmul.f32 %v562, 0.5
        %v567 = vmul.f32 %v563, 0.5
        %v568 = vmul.f32 %v564, 0.5
        %v569 = vadd.f32 %v565, 0.5
        %v570 = vadd.f32 %v566, 0.5
        %v571 = vadd.f32 %v567, 0.5
        %v572 = vadd.f32 %v568, 0.5
        %v573 = vld [vmem:[%s5] sm:$0xff]
        %v574 = vld [vmem:[%s5 + $0x8] sm:$0xff]
        %v575 = vld [vmem:[%s5 + $0x10] sm:$0xff]
        %v576 = vld [vmem:[%s5 + $0x18] sm:$0x1]
        %v577 = vld [vmem:[%s6] sm:$0xff]
        %v578 = vld [vmem:[%s6 + $0x8] sm:$0xff]
        %v579 = vld [vmem:[%s6 + $0x10] sm:$0xff]
        %v580 = vld [vmem:[%s6 + $0x18] sm:$0x1]
        %582 = vset.pattern.permute.xlu0 0
        %583 = vperm.xlu0 %582, %v577
        %v584 = vpop.permute.xlu0 %583
        %587 = vset.pattern.permute.xlu0 0
        %588 = vperm.xlu0 %587, %v578
        %v589 = vpop.permute.xlu0 %588
        %592 = vset.pattern.permute.xlu0 0
        %593 = vperm.xlu0 %592, %v579
        %v594 = vpop.permute.xlu0 %593
        %597 = vset.pattern.permute.xlu0 0
        %598 = vperm.xlu0 %597, %v580
        %v599 = vpop.permute.xlu0 %598
        %v602 = vsel %vm511, %v573, 0
        %v605 = vsel %vm511, %v574, 0
        %v608 = vsel %vm511, %v575, 0
        %v611 = vsel %vm511, %v576, 0
        %v614 = vsel %vm524, %v572, 0
        %616 = vmatpush.msra.mxu0 0.0
        %617 = vmatpush.msra.mxu0 0.0
        %618 = vmatpush.msra.mxu0 0.0
        %619 = vmatpush.msra.mxu0 0.0
        %620 = vmatpush.msra.mxu0 0.0
        %621 = vmatpush.msra.mxu0 0.0
        %622 = vmatpush.msra.mxu0 0.0
        %623 = vmatpush.msra.mxu0 0.0
        %624 = vmatpush.msra.mxu0 0.0
        %625 = vmatpush.msra.mxu0 0.0
        %626 = vmatpush.msra.mxu0 0.0
        %627 = vmatpush.msra.mxu0 0.0
        %628 = vmatpush.msra.mxu0 %v614
        %629 = vmatpush.msra.mxu0 %v571
        %630 = vmatpush.msra.mxu0 %v570
        %631 = vmatpush.msra.mxu0 %v569
        %632 = vmatmul.f32.gmra.mxu0 %v602
        %v633 = vpop.f32.mrf.mxu0
        %v634 = vadd.f32 %v584, %v633
        %635 = vmatmul.f32.gmra.mxu0 %v605
        %v636 = vpop.f32.mrf.mxu0
        %v637 = vadd.f32 %v589, %v636
        %638 = vmatmul.f32.gmra.mxu0 %v608
        %v639 = vpop.f32.mrf.mxu0
        %v640 = vadd.f32 %v594, %v639
        %641 = vmatmul.f32.gmra.mxu0 %v611
        %v642 = vpop.f32.mrf.mxu0
        %v643 = vadd.f32 %v599, %v642
        %644 = vdwg.mxu0
        %v645 = vmax.f32 %v634, 0.0
        %v646 = vmax.f32 %v637, 0.0
        %v647 = vmax.f32 %v640, 0.0
        %v648 = vmax.f32 %v643, 0.0
        %v649 = vld [vmem:[%s7] sm:$0xf]
        %v650 = vld [vmem:[%s8] sm:$0xf]
        %652 = vset.pattern.permute.xlu0 0
        %653 = vperm.xlu0 %652, %v650
        %v654 = vpop.permute.xlu0 %653
        %v657 = vsel %vm511, %v649, 0
        %v660 = vsel %vm524, %v648, 0
        %662 = vmatpush.msra.mxu0 0.0
        %663 = vmatpush.msra.mxu0 0.0
        %664 = vmatpush.msra.mxu0 0.0
        %665 = vmatpush.msra.mxu0 0.0
        %666 = vmatpush.msra.mxu0 0.0
        %667 = vmatpush.msra.mxu0 0.0
        %668 = vmatpush.msra.mxu0 0.0
        %669 = vmatpush.msra.mxu0 0.0
        %670 = vmatpush.msra.mxu0 0.0
        %671 = vmatpush.msra.mxu0 0.0
        %672 = vmatpush.msra.mxu0 0.0
        %673 = vmatpush.msra.mxu0 0.0
        %674 = vmatpush.msra.mxu0 %v660
        %675 = vmatpush.msra.mxu0 %v647
        %676 = vmatpush.msra.mxu0 %v646
        %677 = vmatpush.msra.mxu0 %v645
        %678 = vmatmul.f32.gmra.mxu0 %v657
        %v679 = vpop.f32.mrf.mxu0
        %v680 = vadd.f32 %v654, %v679
        %681 = vdwg.mxu0
        %v682 = vmax.f32 %v680, 0.0
        %683 = vst [vmem:[%s326] sm:$0xf] %v682
        %s684 = sand.u32 %s225, 1
        %s685 = scalar_lea.sflag [#allocation3], %s684
        %s686 = sand.u32 %s225, 1
        %s687 = smul.addr %s686, 4
        %s688 = scalar_lea.vmem [#allocation2], %s687
        // Predicated region
        $region57: #{tpu_custom_call.1} parent=55 // pred_check
          %p689 = pneg %p235
        $region58: #{tpu_custom_call.1} parent=55 // pred_check_branch
          %691 = sbr.rel (%p689) target = $region60
        $region59: #{tpu_custom_call.1} parent=55 // pred_region
          %693 = vsyncadd %s685, 0
          %s694 = smul.addr %s23, 4
          %s695 = scalar_lea.hbm %s9, %s694
          %s697 = sshll.u32 %s688, 4
          %s698 = int_to_ptr.vmem [resolvable:$true] %s697
          %s699 = sshll.u32 %s695, 4
          %s700 = int_to_ptr.hbm [resolvable:$true] %s699
          %702 = dma.vmem_to_hbm [thread:$0]  %s698, 64, %s700, %s685
        $region60: #{tpu_custom_call.1} parent=55 // pred_fallthru
          _
      $region56: #{tpu_custom_call.1} parent=5 // pred_fallthru
        _
      %p703 = scmp.le.s32.totalorder 2, %s18
      // Predicated region
      $region61: #{tpu_custom_call.1} parent=5 // pred_check
        %p704 = pneg %p703
      $region62: #{tpu_custom_call.1} parent=5 // pred_check_branch
        %706 = sbr.rel (%p704) target = $region64
      $region63: #{tpu_custom_call.1} parent=5 // pred_region
        %s707 = ssub.s32 %s18, 2
        // Predicated region
        $region65: #{tpu_custom_call.1} parent=63 // pred_check
          %p708 = pneg %p241
        $region66: #{tpu_custom_call.1} parent=63 // pred_check_branch
          %710 = sbr.rel (%p708) target = $region68
        $region67: #{tpu_custom_call.1} parent=63 // pred_region
          %s711 = sand.u32 %s226, 1
          %s712 = scalar_lea.sflag [#allocation3], %s711
          %s713 = sand.u32 %s226, 1
          %s714 = smul.addr %s713, 4
          %s715 = scalar_lea.vmem [#allocation2], %s714
          %717 = dma.done %s712, 64
        $region68: #{tpu_custom_call.1} parent=63 // pred_fallthru
          _
      $region64: #{tpu_custom_call.1} parent=5 // pred_fallthru
        _
    $region6: #{tpu_custom_call.1} parent=1 // loop_footer
      %s22 = sadd.s32 1, %s18
    $region7: #{tpu_custom_call.1} parent=1 // loop_footer_branch
      %17 = sbr.rel target = $region3
    $region8: #{tpu_custom_call.1} parent=1 // loop_exit
      _
    %718 = vsyncpa [#allocation3], 1
    %s719 = scalar_lea.sflag [#allocation3], 1
    %720 = vsyncpa %s719, 1

</llo_original>
